<compile_context>
chip_gen: v5e
topology: v5e:2x2
jax: 0.10.0
libtpu: 0.0.40
codegen_flags: <defaults>
</compile_context>

<pallas_src>
import functools
import numpy as np

import jax
import jax.numpy as jnp
from jax.experimental import pallas as pl
from jax.experimental.pallas import tpu as pltpu


NEG_BIG = -1e30


def _round_up(x, m):
    return ((x + m - 1) // m) * m


@functools.lru_cache(maxsize=None)
def _vmem_limit_bytes():
    """~3/4 of physical VMEM: ~96 MiB on v5e/v6e, ~48 MiB on v7x."""
    try:
        cap = pltpu.get_tpu_info().vmem_capacity_bytes
        return int(min(96 * 1024 * 1024, max(32 * 1024 * 1024, cap * 3 // 4)))
    except Exception:
        return 48 * 1024 * 1024


# Constant-index (resident) blocks are DMA'd once, so a single VMEM buffer
# suffices; probe pipeline_mode support once so older jax still runs.
try:
    pl.BlockSpec((8, 128), lambda i: (0, 0), pipeline_mode=pl.Buffered(1))
    _HAS_PIPELINE_MODE = True
except Exception:  # pragma: no cover - older jax without pipeline_mode
    _HAS_PIPELINE_MODE = False


def _resident_spec(shape):
    """Whole-array block with constant index map (weights resident in VMEM)."""
    index_map = lambda i: (0,) * len(shape)
    if _HAS_PIPELINE_MODE:
        return pl.BlockSpec(shape, index_map, pipeline_mode=pl.Buffered(1))
    return pl.BlockSpec(shape, index_map)


# ----------------------------------------------------------------------------
# Kernel 1: 4-layer MLP scorer (Linear+ReLU x3, Linear) — the MXU hot path.
# Rows (mention pairs) are tiled over a parallel grid; all weights live fully
# in VMEM (constant index_map, single buffered).  Matmuls are bf16 x bf16 with
# f32 accumulation; bias/ReLU in f32.  The f32 score column of the final
# 128-padded projection is lane-packed into a (1, tile_n) output strip.
# ----------------------------------------------------------------------------
def mlp_kernel(x_ref, w1_ref, b1_ref, w2_ref, b2_ref, w3_ref, b3_ref,
               w4_ref, b4_ref, o_ref):
    # bf16 cast of the activation tile happens here (no separate XLA
    # pad/convert pass over X).
    h = jnp.dot(x_ref[...].astype(jnp.bfloat16), w1_ref[...],
                preferred_element_type=jnp.float32)
    h = jnp.maximum(h + b1_ref[...], 0.0).astype(jnp.bfloat16)
    h = jnp.dot(h, w2_ref[...], preferred_element_type=jnp.float32)
    h = jnp.maximum(h + b2_ref[...], 0.0).astype(jnp.bfloat16)
    h = jnp.dot(h, w3_ref[...], preferred_element_type=jnp.float32)
    h = jnp.maximum(h + b3_ref[...], 0.0).astype(jnp.bfloat16)
    s = jnp.dot(h, w4_ref[...], preferred_element_type=jnp.float32) + b4_ref[...]
    # Lane-pack the f32 score column: (tile_n, 128) -> XLU transpose (off the
    # MXU critical path) -> keep row 0 as a lane-dense (1, tile_n) strip.
    o_ref[...] = s.T[0:1, :]


def _pick_row_tile(n, *, max_tile=512, target_steps=8):
    """Row tile for the MLP grid.

    * single full-extent step for small inputs (any multiple of 16 is legal);
    * otherwise a multiple of 128 (lane-dense packed score output), large
      enough to amortize the ~0.35us per-step overhead, small enough that the
      grid stays >= target_steps deep (feeds both v7x TensorCores, bounds
      tail-padding waste) and capped so the working set fits VMEM.
    """
    if n <= 2 * 128:
        return _round_up(max(n, 1), 16)
    t = _round_up(-(-n // target_steps), 128)
    return int(max(128, min(max_tile, t)))


def mlp_score(x, params):
    """x: (N, D_in) float32 -> scores (>=N,) float32 (first N entries valid)."""
    w1, b1, w2, b2, w3, b3, w4p, b4p = params
    n, d_in = x.shape
    assert w1.shape[0] == d_in, (w1.shape, d_in)

    tile_n = _pick_row_tile(n)
    num_tiles = -(-n // tile_n)   # cdiv; last block may be partial, rows past
                                  # N produce garbage that is discarded below.

    out = pl.pallas_call(
        mlp_kernel,
        out_shape=jax.ShapeDtypeStruct((1, num_tiles * tile_n), jnp.float32),
        grid_spec=pltpu.PrefetchScalarGridSpec(
            num_scalar_prefetch=0,
            grid=(num_tiles,),
            in_specs=[
                # Raw f32 activations straight from HBM; the full (unpadded)
                # D_in lane dim is legal because it equals the array dim.
                pl.BlockSpec((tile_n, d_in), lambda i: (i, 0)),
                _resident_spec(w1.shape), _resident_spec(b1.shape),
                _resident_spec(w2.shape), _resident_spec(b2.shape),
                _resident_spec(w3.shape), _resident_spec(b3.shape),
                _resident_spec(w4p.shape), _resident_spec(b4p.shape),
            ],
            out_specs=pl.BlockSpec((1, tile_n), lambda i: (0, i)),
        ),
        compiler_params=pltpu.CompilerParams(
            dimension_semantics=("parallel",),
            vmem_limit_bytes=_vmem_limit_bytes()),
    )(x, w1, b1, w2, b2, w3, b3, w4p, b4p)
    return out[0]   # (num_tiles*tile_n,) f32 lane-packed scores


# ----------------------------------------------------------------------------
# Kernel 2: per-sentence softmax over (scores ++ epsilon) — row-tiled.
# Each sentence is one row of a (S_pad, P) matrix: positions [0, L) hold the
# sentence scores, position L holds epsilon (0.0), the rest are NEG_BIG so
# exp() kills them.  P is a multiple of 128 (lane-dense).
# ----------------------------------------------------------------------------
def segment_softmax_kernel(s_ref, o_ref):
    s = s_ref[...]
    m = jnp.max(s, axis=-1, keepdims=True)
    e = jnp.exp(s - m)
    inv = pl.reciprocal(jnp.sum(e, axis=-1, keepdims=True), approx=True)  # EUP
    o_ref[...] = e * inv


def _pick_sent_tile(num_sents, p, *, block_budget_bytes=8 << 20):
    # Keep in+out double-buffered f32 blocks around <= budget (matters on
    # v7x's 64 MiB VMEM when P -- driven by the longest sentence -- is large).
    rows = max(8, (block_budget_bytes // (p * 4 * 4)) // 8 * 8)
    return int(min(128, rows, _round_up(max(num_sents, 1), 8)))


def segment_softmax(padded, tile_s):
    s_pad, p = padded.shape
    assert s_pad % tile_s == 0
    return pl.pallas_call(
        segment_softmax_kernel,
        out_shape=jax.ShapeDtypeStruct((s_pad, p), jnp.float32),
        grid_spec=pltpu.PrefetchScalarGridSpec(
            num_scalar_prefetch=0,
            grid=(s_pad // tile_s,),
            in_specs=[pl.BlockSpec((tile_s, p), lambda i: (i, 0))],
            out_specs=pl.BlockSpec((tile_s, p), lambda i: (i, 0)),
        ),
        compiler_params=pltpu.CompilerParams(
            dimension_semantics=("parallel",),
            vmem_limit_bytes=_vmem_limit_bytes()),
    )(padded)


# ----------------------------------------------------------------------------
# Glue: vectorized segment packing (one fused gather + select, no per-sentence
# dynamic-update-slice loop), then the full MentionPairScore forward.
# ----------------------------------------------------------------------------
def build_padded_rows(scores, offsets, lengths, p):
    """scores (>=N,) -> (S_pad, P) rows: [scores_i..., epsilon=0.0, NEG_BIG...].

    # TODO(synk): fold this gather into the softmax pallas_call via scalar
    # prefetch (offsets/lengths in SMEM) so scores never round-trip HBM.
    """
    col = jnp.arange(p, dtype=jnp.int32)[None, :]          # (1, P)
    off = offsets[:, None]                                   # (S_pad, 1)
    lns = lengths[:, None]                                    # (S_pad, 1)
    idx = jnp.clip(off + col, 0, scores.shape[0] - 1)        # (S_pad, P)
    gathered = jnp.take(scores, idx, axis=0)                 # (S_pad, P)
    return jnp.where(col < lns, gathered,
                     jnp.where(col == lns, 0.0, NEG_BIG)).astype(jnp.float32)


def mention_pair_score_forward(x_list, params):
    lengths = [int(x.shape[0]) for x in x_list]
    num_sents = len(lengths)
    x_cat = jnp.concatenate(x_list, axis=0).astype(jnp.float32)

    # Hot path 1: 4-layer MLP scorer (raw f32 in, lane-packed f32 scores out).
    scores = mlp_score(x_cat, params)

    # Pack per-sentence rows (+ epsilon).  The sentence axis is padded up
    # front (pad rows have length 0) so the softmax grid divides exactly and
    # no extra copy of the (S, P) matrix is ever made.
    max_len = max(lengths)
    p = _round_up(max_len + 1, 128)
    tile_s = _pick_sent_tile(num_sents, p)
    s_pad = _round_up(num_sents, tile_s)
    offsets = np.zeros(s_pad, dtype=np.int32)
    offsets[1:num_sents] = np.cumsum(lengths[:-1])
    lens = np.zeros(s_pad, dtype=np.int32)
    lens[:num_sents] = lengths
    padded = build_padded_rows(scores, jnp.asarray(offsets),
                               jnp.asarray(lens), p)

    # Hot path 2: per-sentence softmax over (scores ++ epsilon).
    probs = segment_softmax(padded, tile_s)                  # (S_pad, P)

    # The PyTorch module returns a python list of (L_i+1, 1) tensors.  Split
    # on host after a single device->host transfer instead of dispatching
    # O(num_sents) tiny XLA slice ops.
    probs_np = np.asarray(probs)
    return [probs_np[i, :ln + 1].reshape(ln + 1, 1)
            for i, ln in enumerate(lengths)]


# ----------------------------------------------------------------------------
# Parameter init (torch.nn.Linear-style uniform(-k, k)).  Hidden fan-out dims
# are zero-padded to 128-multiples (ReLU(0+0)=0 lanes contribute nothing);
# the layer-1 fan-in is left unpadded.  Weights bf16, biases f32, final
# projection padded to 128 columns (score in column 0).
# ----------------------------------------------------------------------------
def init_params(key, in_dim, m1_dim, m2_dim, *, out_pad=128):
    m1_p, m2_p = _round_up(m1_dim, 128), _round_up(m2_dim, 128)

    def linear(key, fan_in, fan_out, fi_p, fo_p):
        kw, kb = jax.random.split(key)
        k = 1.0 / jnp.sqrt(fan_in)
        w = jax.random.uniform(kw, (fan_in, fan_out), jnp.float32, -k, k)
        b = jax.random.uniform(kb, (1, fan_out), jnp.float32, -k, k)
        wp = jnp.zeros((fi_p, fo_p), jnp.float32).at[:fan_in, :fan_out].set(w)
        bp = jnp.zeros((1, fo_p), jnp.float32).at[:, :fan_out].set(b)
        return wp.astype(jnp.bfloat16), bp

    k1, k2, k3, k4 = jax.random.split(key, 4)
    w1, b1 = linear(k1, in_dim, m1_dim, in_dim, m1_p)   # fan-in NOT padded
    w2, b2 = linear(k2, m1_dim, m2_dim, m1_p, m2_p)
    w3, b3 = linear(k3, m2_dim, m2_dim, m2_p, m2_p)
    w4, b4 = linear(k4, m2_dim, 1, m2_p, out_pad)
    return (w1, b1, w2, b2, w3, b3, w4, b4)


def reference_forward(x_list, params):
    """Pure-JAX reference with matching bf16-matmul / f32-accumulate math."""
    w1, b1, w2, b2, w3, b3, w4p, b4p = params
    x = jnp.concatenate(x_list, axis=0).astype(jnp.float32)
    h = x.astype(jnp.bfloat16)
    h = jnp.maximum(jnp.dot(h, w1, preferred_element_type=jnp.float32) + b1,
                    0.0).astype(jnp.bfloat16)
    h = jnp.maximum(jnp.dot(h, w2, preferred_element_type=jnp.float32) + b2,
                    0.0).astype(jnp.bfloat16)
    h = jnp.maximum(jnp.dot(h, w3, preferred_element_type=jnp.float32) + b3,
                    0.0).astype(jnp.bfloat16)
    score = (jnp.dot(h, w4p, preferred_element_type=jnp.float32) + b4p)[:, 0]
    outs, off = [], 0
    for xi in x_list:
        ln = xi.shape[0]
        s = jnp.concatenate([score[off:off + ln], jnp.zeros((1,), jnp.float32)])
        outs.append(jax.nn.softmax(s).reshape(ln + 1, 1))
        off += ln
    return outs


if __name__ == "__main__":
    key = jax.random.PRNGKey(0)
    # Small stand-ins for the real (1000, 500) hidden dims; deliberately
    # non-multiples of 128 so the padding paths are exercised.
    in_dim, m1_dim, m2_dim = 96, 160, 72
    sent_lengths = [5, 8, 3]                      # variable-length "sentences"

    kp, *kx = jax.random.split(key, 1 + len(sent_lengths))
    params = init_params(kp, in_dim, m1_dim, m2_dim)
    x_list = [jax.random.normal(k, (ln, in_dim), jnp.float32)
              for k, ln in zip(kx, sent_lengths)]

    logits_list = mention_pair_score_forward(x_list, params)
    logits_list = jax.block_until_ready(logits_list)

    ref_list = reference_forward(x_list, params)
    for got, ref in zip(logits_list, ref_list):
        assert tuple(got.shape) == tuple(ref.shape)
        assert np.allclose(np.asarray(got), np.asarray(ref),
                           rtol=1e-2, atol=1e-3), (got, ref)

    print("KERNEL_OK")
</pallas_src>

<mosaic_0001>
module attributes {stable_mosaic.version = 11 : i64} {
  func.func @mlp_kernel(%arg0: i32, %arg1: memref<16x96xf32, #tpu.memory_space<vmem>>, %arg2: memref<96x256xbf16, #tpu.memory_space<vmem>>, %arg3: memref<1x256xf32, #tpu.memory_space<vmem>>, %arg4: memref<256x128xbf16, #tpu.memory_space<vmem>>, %arg5: memref<1x128xf32, #tpu.memory_space<vmem>>, %arg6: memref<128x128xbf16, #tpu.memory_space<vmem>>, %arg7: memref<1x128xf32, #tpu.memory_space<vmem>>, %arg8: memref<128x128xbf16, #tpu.memory_space<vmem>>, %arg9: memref<1x128xf32, #tpu.memory_space<vmem>>, %arg10: memref<1x16xf32, #tpu.memory_space<vmem>>) attributes {dimension_semantics = [#tpu.dimension_semantics<parallel>], iteration_bounds = array<i64: 1>, scalar_prefetch = 0 : i64, scratch_operands = 0 : i64, tpu.core_type = #tpu.core_type<tc>, window_params = [{transform_indices = @transform_0, window_bounds = array<i64: 16, 96>}, {pipeline_mode = #tpu.pipeline_mode<synchronous>, transform_indices = @transform_1, window_bounds = array<i64: 96, 256>}, {pipeline_mode = #tpu.pipeline_mode<synchronous>, transform_indices = @transform_2, window_bounds = array<i64: 1, 256>}, {pipeline_mode = #tpu.pipeline_mode<synchronous>, transform_indices = @transform_3, window_bounds = array<i64: 256, 128>}, {pipeline_mode = #tpu.pipeline_mode<synchronous>, transform_indices = @transform_4, window_bounds = array<i64: 1, 128>}, {pipeline_mode = #tpu.pipeline_mode<synchronous>, transform_indices = @transform_5, window_bounds = array<i64: 128, 128>}, {pipeline_mode = #tpu.pipeline_mode<synchronous>, transform_indices = @transform_6, window_bounds = array<i64: 1, 128>}, {pipeline_mode = #tpu.pipeline_mode<synchronous>, transform_indices = @transform_7, window_bounds = array<i64: 128, 128>}, {pipeline_mode = #tpu.pipeline_mode<synchronous>, transform_indices = @transform_8, window_bounds = array<i64: 1, 128>}, {transform_indices = @transform_9, window_bounds = array<i64: 1, 16>}]} {
    %c0 = arith.constant 0 : index
    %c0_0 = arith.constant 0 : index
    %0 = vector.load %arg1[%c0, %c0_0] : memref<16x96xf32, #tpu.memory_space<vmem>>, vector<16x96xf32>
    %1 = arith.truncf %0 : vector<16x96xf32> to vector<16x96xbf16>
    %c0_1 = arith.constant 0 : index
    %c0_2 = arith.constant 0 : index
    %2 = vector.load %arg2[%c0_1, %c0_2] : memref<96x256xbf16, #tpu.memory_space<vmem>>, vector<96x256xbf16>
    %cst = arith.constant dense<0.000000e+00> : vector<16x256xf32>
    %3 = tpu.matmul %1, %2, %cst {dimension_numbers = #tpu.dot_dimension_numbers<[1], [0], [0], [1], [0, 0, 1, 1], [], []>} : vector<16x96xbf16>, vector<96x256xbf16>, vector<16x256xf32> -> vector<16x256xf32>
    %c0_3 = arith.constant 0 : index
    %c0_4 = arith.constant 0 : index
    %4 = vector.load %arg3[%c0_3, %c0_4] : memref<1x256xf32, #tpu.memory_space<vmem>>, vector<1x256xf32>
    %5 = vector.broadcast %4 : vector<1x256xf32> to vector<16x256xf32>
    %6 = arith.addf %3, %5 : vector<16x256xf32>
    %cst_5 = arith.constant 0.000000e+00 : f32
    %7 = vector.broadcast %cst_5 : f32 to vector<16x256xf32>
    %8 = arith.maximumf %6, %7 : vector<16x256xf32>
    %9 = arith.truncf %8 : vector<16x256xf32> to vector<16x256xbf16>
    %c0_6 = arith.constant 0 : index
    %c0_7 = arith.constant 0 : index
    %10 = vector.load %arg4[%c0_6, %c0_7] : memref<256x128xbf16, #tpu.memory_space<vmem>>, vector<256x128xbf16>
    %cst_8 = arith.constant dense<0.000000e+00> : vector<16x128xf32>
    %11 = tpu.matmul %9, %10, %cst_8 {dimension_numbers = #tpu.dot_dimension_numbers<[1], [0], [0], [1], [0, 0, 1, 1], [], []>} : vector<16x256xbf16>, vector<256x128xbf16>, vector<16x128xf32> -> vector<16x128xf32>
    %c0_9 = arith.constant 0 : index
    %c0_10 = arith.constant 0 : index
    %12 = vector.load %arg5[%c0_9, %c0_10] : memref<1x128xf32, #tpu.memory_space<vmem>>, vector<1x128xf32>
    %13 = vector.broadcast %12 : vector<1x128xf32> to vector<16x128xf32>
    %14 = arith.addf %11, %13 : vector<16x128xf32>
    %cst_11 = arith.constant 0.000000e+00 : f32
    %15 = vector.broadcast %cst_11 : f32 to vector<16x128xf32>
    %16 = arith.maximumf %14, %15 : vector<16x128xf32>
    %17 = arith.truncf %16 : vector<16x128xf32> to vector<16x128xbf16>
    %c0_12 = arith.constant 0 : index
    %c0_13 = arith.constant 0 : index
    %18 = vector.load %arg6[%c0_12, %c0_13] : memref<128x128xbf16, #tpu.memory_space<vmem>>, vector<128x128xbf16>
    %cst_14 = arith.constant dense<0.000000e+00> : vector<16x128xf32>
    %19 = tpu.matmul %17, %18, %cst_14 {dimension_numbers = #tpu.dot_dimension_numbers<[1], [0], [0], [1], [0, 0, 1, 1], [], []>} : vector<16x128xbf16>, vector<128x128xbf16>, vector<16x128xf32> -> vector<16x128xf32>
    %c0_15 = arith.constant 0 : index
    %c0_16 = arith.constant 0 : index
    %20 = vector.load %arg7[%c0_15, %c0_16] : memref<1x128xf32, #tpu.memory_space<vmem>>, vector<1x128xf32>
    %21 = vector.broadcast %20 : vector<1x128xf32> to vector<16x128xf32>
    %22 = arith.addf %19, %21 : vector<16x128xf32>
    %cst_17 = arith.constant 0.000000e+00 : f32
    %23 = vector.broadcast %cst_17 : f32 to vector<16x128xf32>
    %24 = arith.maximumf %22, %23 : vector<16x128xf32>
    %25 = arith.truncf %24 : vector<16x128xf32> to vector<16x128xbf16>
    %c0_18 = arith.constant 0 : index
    %c0_19 = arith.constant 0 : index
    %26 = vector.load %arg8[%c0_18, %c0_19] : memref<128x128xbf16, #tpu.memory_space<vmem>>, vector<128x128xbf16>
    %cst_20 = arith.constant dense<0.000000e+00> : vector<16x128xf32>
    %27 = tpu.matmul %25, %26, %cst_20 {dimension_numbers = #tpu.dot_dimension_numbers<[1], [0], [0], [1], [0, 0, 1, 1], [], []>} : vector<16x128xbf16>, vector<128x128xbf16>, vector<16x128xf32> -> vector<16x128xf32>
    %c0_21 = arith.constant 0 : index
    %c0_22 = arith.constant 0 : index
    %28 = vector.load %arg9[%c0_21, %c0_22] : memref<1x128xf32, #tpu.memory_space<vmem>>, vector<1x128xf32>
    %29 = vector.broadcast %28 : vector<1x128xf32> to vector<16x128xf32>
    %30 = arith.addf %27, %29 : vector<16x128xf32>
    %31 = tpu.transpose %30, [1, 0] : vector<16x128xf32> -> vector<128x16xf32>
    %32 = vector.extract_strided_slice %31 {offsets = [0, 0], sizes = [1, 16], strides = [1, 1]} : vector<128x16xf32> to vector<1x16xf32>
    %c0_23 = arith.constant 0 : index
    %c0_24 = arith.constant 0 : index
    %33 = vector.load %arg10[%c0_23, %c0_24] : memref<1x16xf32, #tpu.memory_space<vmem>>, vector<1x16xf32>
    tpu.vector_store %arg10[%c0_23, %c0_24], %32 {strides = array<i32>} : memref<1x16xf32, #tpu.memory_space<vmem>>, vector<1x16xf32>,
    return
  }
  func.func @transform_0(%arg0: i32) -> (i32, i32) {
    %c0_i32 = arith.constant 0 : i32
    %c0_i32_0 = arith.constant 0 : i32
    return %arg0, %c0_i32 : i32, i32
  }
  func.func @transform_1(%arg0: i32) -> (i32, i32) {
    %c0_i32 = arith.constant 0 : i32
    %c0_i32_0 = arith.constant 0 : i32
    %c0_i32_1 = arith.constant 0 : i32
    return %c0_i32, %c0_i32_0 : i32, i32
  }
  func.func @transform_2(%arg0: i32) -> (i32, i32) {
    %c0_i32 = arith.constant 0 : i32
    %c0_i32_0 = arith.constant 0 : i32
    %c0_i32_1 = arith.constant 0 : i32
    return %c0_i32, %c0_i32_0 : i32, i32
  }
  func.func @transform_3(%arg0: i32) -> (i32, i32) {
    %c0_i32 = arith.constant 0 : i32
    %c0_i32_0 = arith.constant 0 : i32
    %c0_i32_1 = arith.constant 0 : i32
    return %c0_i32, %c0_i32_0 : i32, i32
  }
  func.func @transform_4(%arg0: i32) -> (i32, i32) {
    %c0_i32 = arith.constant 0 : i32
    %c0_i32_0 = arith.constant 0 : i32
    %c0_i32_1 = arith.constant 0 : i32
    return %c0_i32, %c0_i32_0 : i32, i32
  }
  func.func @transform_5(%arg0: i32) -> (i32, i32) {
    %c0_i32 = arith.constant 0 : i32
    %c0_i32_0 = arith.constant 0 : i32
    %c0_i32_1 = arith.constant 0 : i32
    return %c0_i32, %c0_i32_0 : i32, i32
  }
  func.func @transform_6(%arg0: i32) -> (i32, i32) {
    %c0_i32 = arith.constant 0 : i32
    %c0_i32_0 = arith.constant 0 : i32
    %c0_i32_1 = arith.constant 0 : i32
    return %c0_i32, %c0_i32_0 : i32, i32
  }
  func.func @transform_7(%arg0: i32) -> (i32, i32) {
    %c0_i32 = arith.constant 0 : i32
    %c0_i32_0 = arith.constant 0 : i32
    %c0_i32_1 = arith.constant 0 : i32
    return %c0_i32, %c0_i32_0 : i32, i32
  }
  func.func @transform_8(%arg0: i32) -> (i32, i32) {
    %c0_i32 = arith.constant 0 : i32
    %c0_i32_0 = arith.constant 0 : i32
    %c0_i32_1 = arith.constant 0 : i32
    return %c0_i32, %c0_i32_0 : i32, i32
  }
  func.func @transform_9(%arg0: i32) -> (i32, i32) {
    %c0_i32 = arith.constant 0 : i32
    %c0_i32_0 = arith.constant 0 : i32
    return %c0_i32, %arg0 : i32, i32
  }
}

</mosaic_0001>

<llo_original>
// kernel: tpu_custom_call.1
$region0: #{tpu_custom_call.1}
  #allocation0 [shape = 'u32[]', space=smem, size = 0x4, offset = 0x4, fixed_abs, tag = 'smem constant byte address 0x4 - core index']
  #allocation1 [shape = 'u32[72,128]{1,0:T(1,128)}', space=vmem, size = 0x9000, scoped, tag = 'internal scratch']
  %s0 = inlined_call_operand.hbm [shape: f32[16,96], index: 0, kind: input, shape index: {}]
  %s1 = inlined_call_operand.hbm [shape: bf16[96,256], index: 1, kind: input, shape index: {}]
  %s2 = inlined_call_operand.hbm [shape: f32[1,256], index: 2, kind: input, shape index: {}]
  %s3 = inlined_call_operand.hbm [shape: bf16[256,128], index: 3, kind: input, shape index: {}]
  %s4 = inlined_call_operand.vmem [shape: f32[1,128], index: 4, kind: input, shape index: {}]
  %s5 = inlined_call_operand.hbm [shape: bf16[128,128], index: 5, kind: input, shape index: {}]
  %s6 = inlined_call_operand.vmem [shape: f32[1,128], index: 6, kind: input, shape index: {}]
  %s7 = inlined_call_operand.hbm [shape: bf16[128,128], index: 7, kind: input, shape index: {}]
  %s8 = inlined_call_operand.vmem [shape: f32[1,128], index: 8, kind: input, shape index: {}]
  %s9 = inlined_call_operand.hbm [shape: f32[1,16], index: 9, kind: output, shape index: {}]
  %s10 = sld [smem:[#allocation0]]
  $region70: #{tpu_custom_call.1} parent=0
    _
  %s12 = ssub.s32 1, %s10
  %s13 = scalar_select 0, %s12, %s10
  $region1: #{tpu_custom_call.1} parent=0
    #allocation2 [shape = 'u8[8192]{0}', space=vmem, size = 0x2000, scoped, tag = 'input window, operand 0, single buffered']
    #allocation3 [shape = 's32[1]{0}', space=sflag, size = 0x4, scoped, tag = 'scoped memory for tpu_custom_call.1']
    #allocation4 [shape = 's32[1]{0}', space=sflag, size = 0x4, scoped, tag = 'scoped memory for tpu_custom_call.1']
    #allocation5 [shape = 'u8[49152]{0}', space=vmem, size = 0xc000, scoped, tag = 'input window, operand 1, single buffered']
    #allocation6 [shape = 's32[1]{0}', space=sflag, size = 0x4, scoped, tag = 'scoped memory for tpu_custom_call.1']
    #allocation7 [shape = 'u8[1024]{0}', space=vmem, size = 0x400, scoped, tag = 'input window, operand 2, single buffered']
    #allocation8 [shape = 'u8[65536]{0}', space=vmem, size = 0x10000, scoped, tag = 'input window, operand 3, single buffered']
    #allocation9 [shape = 's32[1]{0}', space=sflag, size = 0x4, scoped, tag = 'scoped memory for tpu_custom_call.1']
    #allocation10 [shape = 'u8[32768]{0}', space=vmem, size = 0x8000, scoped, tag = 'input window, operand 5, single buffered']
    #allocation11 [shape = 'u8[32768]{0}', space=vmem, size = 0x8000, scoped, tag = 'input window, operand 7, single buffered']
    #allocation12 [shape = 's32[1]{0}', space=sflag, size = 0x4, scoped, tag = 'scoped memory for tpu_custom_call.1']
    #allocation13 [shape = 'u8[512]{0}', space=vmem, size = 0x400, scoped, tag = 'output window, operand 0, single buffered']
    %14 = vsyncpa [#allocation3], 0
    %15 = vsyncpa [#allocation6], 0
    %16 = vsyncpa [#allocation9], 0
    %17 = vsyncpa [#allocation12], 0
    %18 = vsyncpa [#allocation4], 0
    // Predicated region
    $region2: #{tpu_custom_call.1} parent=1 // pred_check
      _
    $region3: #{tpu_custom_call.1} parent=1 // pred_check_branch
      %20 = sbr.rel (0) target = $region5
    $region4: #{tpu_custom_call.1} parent=1 // pred_region
      %22 = vsyncadd [#allocation3], 0
      %s23 = sshll.u32 %s0, 4
      %s24 = int_to_ptr.hbm [resolvable:$true] %s23
      %s25 = sshll.u32 [#allocation2], 4
      %s26 = int_to_ptr.vmem [resolvable:$true] %s25
      %31 = dma.hbm_to_vmem [thread:$0]  %s24, 256, %s26, [#allocation3], 128, 128, 8
    $region5: #{tpu_custom_call.1} parent=1 // pred_fallthru
      _
    // Predicated region
    $region6: #{tpu_custom_call.1} parent=1 // pred_check
      _
    $region7: #{tpu_custom_call.1} parent=1 // pred_check_branch
      %33 = sbr.rel (0) target = $region9
    $region8: #{tpu_custom_call.1} parent=1 // pred_region
      %35 = vsyncadd [#allocation6], 0
      %s36 = sshll.u32 %s1, 4
      %s37 = int_to_ptr.hbm [resolvable:$true] %s36
      %s38 = sshll.u32 [#allocation5], 4
      %s39 = int_to_ptr.vmem [resolvable:$true] %s38
      %44 = dma.hbm_to_vmem [thread:$0]  %s37, 1536, %s39, [#allocation6], 128, 128, 8
    $region9: #{tpu_custom_call.1} parent=1 // pred_fallthru
      _
    // Predicated region
    $region10: #{tpu_custom_call.1} parent=1 // pred_check
      _
    $region11: #{tpu_custom_call.1} parent=1 // pred_check_branch
      %46 = sbr.rel (0) target = $region13
    $region12: #{tpu_custom_call.1} parent=1 // pred_region
      %48 = vsyncadd [#allocation6], 0
      %s50 = sshll.u32 %s2, 4
      %s51 = int_to_ptr.hbm [resolvable:$true] %s50
      %s52 = sshll.u32 [#allocation7], 4
      %s53 = int_to_ptr.vmem [resolvable:$true] %s52
      %55 = dma.hbm_to_vmem [thread:$0]  %s51, 32, %s53, [#allocation6]
    $region13: #{tpu_custom_call.1} parent=1 // pred_fallthru
      _
    // Predicated region
    $region14: #{tpu_custom_call.1} parent=1 // pred_check
      _
    $region15: #{tpu_custom_call.1} parent=1 // pred_check_branch
      %57 = sbr.rel (0) target = $region17
    $region16: #{tpu_custom_call.1} parent=1 // pred_region
      %59 = vsyncadd [#allocation9], 0
      %s60 = sshll.u32 %s3, 4
      %s61 = int_to_ptr.hbm [resolvable:$true] %s60
      %s62 = sshll.u32 [#allocation8], 4
      %s63 = int_to_ptr.vmem [resolvable:$true] %s62
      %68 = dma.hbm_to_vmem [thread:$0]  %s61, 2048, %s63, [#allocation9], 64, 64, 4
    $region17: #{tpu_custom_call.1} parent=1 // pred_fallthru
      _
    // Predicated region
    $region18: #{tpu_custom_call.1} parent=1 // pred_check
      _
    $region19: #{tpu_custom_call.1} parent=1 // pred_check_branch
      %70 = sbr.rel (0) target = $region21
    $region20: #{tpu_custom_call.1} parent=1 // pred_region
      _
    $region21: #{tpu_custom_call.1} parent=1 // pred_fallthru
      _
    // Predicated region
    $region22: #{tpu_custom_call.1} parent=1 // pred_check
      _
    $region23: #{tpu_custom_call.1} parent=1 // pred_check_branch
      %72 = sbr.rel (0) target = $region25
    $region24: #{tpu_custom_call.1} parent=1 // pred_region
      %74 = vsyncadd [#allocation9], 0
      %s75 = sshll.u32 %s5, 4
      %s76 = int_to_ptr.hbm [resolvable:$true] %s75
      %s77 = sshll.u32 [#allocation10], 4
      %s78 = int_to_ptr.vmem [resolvable:$true] %s77
      %83 = dma.hbm_to_vmem [thread:$0]  %s76, 1024, %s78, [#allocation9], 64, 64, 4
    $region25: #{tpu_custom_call.1} parent=1 // pred_fallthru
      _
    // Predicated region
    $region26: #{tpu_custom_call.1} parent=1 // pred_check
      _
    $region27: #{tpu_custom_call.1} parent=1 // pred_check_branch
      %85 = sbr.rel (0) target = $region29
    $region28: #{tpu_custom_call.1} parent=1 // pred_region
      _
    $region29: #{tpu_custom_call.1} parent=1 // pred_fallthru
      _
    // Predicated region
    $region30: #{tpu_custom_call.1} parent=1 // pred_check
      _
    $region31: #{tpu_custom_call.1} parent=1 // pred_check_branch
      %87 = sbr.rel (0) target = $region33
    $region32: #{tpu_custom_call.1} parent=1 // pred_region
      %89 = vsyncadd [#allocation12], 0
      %s90 = sshll.u32 %s7, 4
      %s91 = int_to_ptr.hbm [resolvable:$true] %s90
      %s92 = sshll.u32 [#allocation11], 4
      %s93 = int_to_ptr.vmem [resolvable:$true] %s92
      %98 = dma.hbm_to_vmem [thread:$0]  %s91, 1024, %s93, [#allocation12], 64, 64, 4
    $region33: #{tpu_custom_call.1} parent=1 // pred_fallthru
      _
    // Predicated region
    $region34: #{tpu_custom_call.1} parent=1 // pred_check
      _
    $region35: #{tpu_custom_call.1} parent=1 // pred_check_branch
      %100 = sbr.rel (0) target = $region37
    $region36: #{tpu_custom_call.1} parent=1 // pred_region
      _
    $region37: #{tpu_custom_call.1} parent=1 // pred_fallthru
      _
    // Predicated region
    $region38: #{tpu_custom_call.1} parent=1 // pred_check
      _
    $region39: #{tpu_custom_call.1} parent=1 // pred_check_branch
      %102 = sbr.rel (0) target = $region41
    $region40: #{tpu_custom_call.1} parent=1 // pred_region
      %104 = dma.done [#allocation3], 256
    $region41: #{tpu_custom_call.1} parent=1 // pred_fallthru
      _
    // Predicated region
    $region42: #{tpu_custom_call.1} parent=1 // pred_check
      _
    $region43: #{tpu_custom_call.1} parent=1 // pred_check_branch
      %106 = sbr.rel (0) target = $region45
    $region44: #{tpu_custom_call.1} parent=1 // pred_region
      %108 = dma.done [#allocation6], 1536
    $region45: #{tpu_custom_call.1} parent=1 // pred_fallthru
      _
    // Predicated region
    $region46: #{tpu_custom_call.1} parent=1 // pred_check
      _
    $region47: #{tpu_custom_call.1} parent=1 // pred_check_branch
      %110 = sbr.rel (0) target = $region49
    $region48: #{tpu_custom_call.1} parent=1 // pred_region
      %112 = dma.done [#allocation6], 32
    $region49: #{tpu_custom_call.1} parent=1 // pred_fallthru
      _
    // Predicated region
    $region50: #{tpu_custom_call.1} parent=1 // pred_check
      _
    $region51: #{tpu_custom_call.1} parent=1 // pred_check_branch
      %114 = sbr.rel (0) target = $region53
    $region52: #{tpu_custom_call.1} parent=1 // pred_region
      %116 = dma.done [#allocation9], 2048
    $region53: #{tpu_custom_call.1} parent=1 // pred_fallthru
      _
    // Predicated region
    $region54: #{tpu_custom_call.1} parent=1 // pred_check
      _
    $region55: #{tpu_custom_call.1} parent=1 // pred_check_branch
      %118 = sbr.rel (0) target = $region57
    $region56: #{tpu_custom_call.1} parent=1 // pred_region
      %120 = dma.done [#allocation9], 1024
    $region57: #{tpu_custom_call.1} parent=1 // pred_fallthru
      _
    // Predicated region
    $region58: #{tpu_custom_call.1} parent=1 // pred_check
      _
    $region59: #{tpu_custom_call.1} parent=1 // pred_check_branch
      %122 = sbr.rel (0) target = $region61
    $region60: #{tpu_custom_call.1} parent=1 // pred_region
      %124 = dma.done [#allocation12], 1024
    $region61: #{tpu_custom_call.1} parent=1 // pred_fallthru
      _
    %v126 = vld [vmem:[#allocation2] sm:$0xff]
    %v127 = vld [vmem:[#allocation2 + $0x8] sm:$0xff]
    %v128 = vpack.c.bf16 %v127, %v126
    %v129 = vld [vmem:[#allocation5] sm:$0xff]
    %v130 = vld [vmem:[#allocation5 + $0x8] sm:$0xff]
    %v131 = vld [vmem:[#allocation5 + $0x10] sm:$0xff]
    %v132 = vld [vmem:[#allocation5 + $0x18] sm:$0xff]
    %v133 = vld [vmem:[#allocation5 + $0x20] sm:$0xff]
    %v134 = vld [vmem:[#allocation5 + $0x28] sm:$0xff]
    %v135 = vld [vmem:[#allocation5 + $0x30] sm:$0xff]
    %v136 = vld [vmem:[#allocation5 + $0x38] sm:$0xff]
    %v137 = vld [vmem:[#allocation5 + $0x40] sm:$0xff]
    %v138 = vld [vmem:[#allocation5 + $0x48] sm:$0xff]
    %v139 = vld [vmem:[#allocation5 + $0x50] sm:$0xff]
    %v140 = vld [vmem:[#allocation5 + $0x58] sm:$0xff]
    %v141 = vld [vmem:[#allocation7] sm:$0x3]
    %v143 = vperm.slane %v141, 0
    %v144 = vperm.slane %v141, 1
    %v159 = vunpack.c.l.b16 %v129
    %v160 = vunpack.c.h.b16 %v129
    %v161 = vunpack.c.l.b16 %v130
    %v162 = vunpack.c.h.b16 %v130
    %v163 = vunpack.c.l.b16 %v131
    %v164 = vunpack.c.h.b16 %v131
    %v165 = vunpack.c.l.b16 %v132
    %v166 = vunpack.c.h.b16 %v132
    %v167 = vunpack.c.l.b16 %v133
    %v168 = vunpack.c.h.b16 %v133
    %v169 = vunpack.c.l.b16 %v134
    %v170 = vunpack.c.h.b16 %v134
    %v171 = vunpack.c.l.b16 %v135
    %v172 = vunpack.c.h.b16 %v135
    %v173 = vunpack.c.l.b16 %v136
    %v174 = vunpack.c.h.b16 %v136
    %v175 = vunpack.c.l.b16 %v137
    %v176 = vunpack.c.h.b16 %v137
    %v177 = vunpack.c.l.b16 %v138
    %v178 = vunpack.c.h.b16 %v138
    %v179 = vunpack.c.l.b16 %v139
    %v180 = vunpack.c.h.b16 %v139
    %v181 = vunpack.c.l.b16 %v140
    %v182 = vunpack.c.h.b16 %v140
    %v183 = vpack.c.b16 %v161, %v159
    %v184 = vpack.c.b16 %v162, %v160
    %v185 = vpack.c.b16 %v165, %v163
    %v186 = vpack.c.b16 %v166, %v164
    %v187 = vpack.c.b16 %v169, %v167
    %v188 = vpack.c.b16 %v170, %v168
    %v189 = vpack.c.b16 %v173, %v171
    %v190 = vpack.c.b16 %v174, %v172
    %v191 = vpack.c.b16 %v177, %v175
    %v192 = vpack.c.b16 %v178, %v176
    %v193 = vpack.c.b16 %v181, %v179
    %v194 = vpack.c.b16 %v182, %v180
    %vm207 = vcmask 785408
    %v209 = vsel %vm207, %v128, 0
    %211 = vmatpush.bf16.msra.mxu0 0
    %212 = vmatpush.bf16.msra.mxu0 0
    %213 = vmatpush.bf16.msra.mxu0 %v193
    %214 = vmatpush.bf16.msra.mxu0 %v191
    %215 = vmatpush.bf16.msra.mxu0 %v189
    %216 = vmatpush.bf16.msra.mxu0 %v187
    %217 = vmatpush.bf16.msra.mxu0 %v185
    %218 = vmatpush.bf16.msra.mxu0 %v183
    %219 = vmatmul.bf16.gmra.mxu0 %v209
    %v220 = vpop.f32.mrf.mxu0
    %v221 = vadd.f32 %v143, %v220
    %v222 = vpop.f32.mrf.mxu0
    %v223 = vadd.f32 %v143, %v222
    %224 = vdwg.mxu0
    %225 = vmatpush.bf16.msra.mxu0 0
    %226 = vmatpush.bf16.msra.mxu0 0
    %227 = vmatpush.bf16.msra.mxu0 %v194
    %228 = vmatpush.bf16.msra.mxu0 %v192
    %229 = vmatpush.bf16.msra.mxu0 %v190
    %230 = vmatpush.bf16.msra.mxu0 %v188
    %231 = vmatpush.bf16.msra.mxu0 %v186
    %232 = vmatpush.bf16.msra.mxu0 %v184
    %233 = vmatmul.bf16.gmra.mxu0 %v209
    %v234 = vpop.f32.mrf.mxu0
    %v235 = vadd.f32 %v144, %v234
    %v236 = vpop.f32.mrf.mxu0
    %v237 = vadd.f32 %v144, %v236
    %238 = vdwg.mxu0
    %v239 = vmax.f32 %v221, 0.0
    %v240 = vmax.f32 %v235, 0.0
    %v241 = vmax.f32 %v223, 0.0
    %v242 = vmax.f32 %v237, 0.0
    %v243 = vpack.c.bf16 %v241, %v239
    %v244 = vpack.c.bf16 %v242, %v240
    %v245 = vld [vmem:[#allocation8] sm:$0xf]
    %v246 = vld [vmem:[#allocation8 + $0x4] sm:$0xf]
    %v247 = vld [vmem:[#allocation8 + $0x8] sm:$0xf]
    %v248 = vld [vmem:[#allocation8 + $0xc] sm:$0xf]
    %v249 = vld [vmem:[#allocation8 + $0x10] sm:$0xf]
    %v250 = vld [vmem:[#allocation8 + $0x14] sm:$0xf]
    %v251 = vld [vmem:[#allocation8 + $0x18] sm:$0xf]
    %v252 = vld [vmem:[#allocation8 + $0x1c] sm:$0xf]
    %v253 = vld [vmem:[#allocation8 + $0x20] sm:$0xf]
    %v254 = vld [vmem:[#allocation8 + $0x24] sm:$0xf]
    %v255 = vld [vmem:[#allocation8 + $0x28] sm:$0xf]
    %v256 = vld [vmem:[#allocation8 + $0x2c] sm:$0xf]
    %v257 = vld [vmem:[#allocation8 + $0x30] sm:$0xf]
    %v258 = vld [vmem:[#allocation8 + $0x34] sm:$0xf]
    %v259 = vld [vmem:[#allocation8 + $0x38] sm:$0xf]
    %v260 = vld [vmem:[#allocation8 + $0x3c] sm:$0xf]
    %v261 = vld [vmem:[#allocation8 + $0x40] sm:$0xf]
    %v262 = vld [vmem:[#allocation8 + $0x44] sm:$0xf]
    %v263 = vld [vmem:[#allocation8 + $0x48] sm:$0xf]
    %v264 = vld [vmem:[#allocation8 + $0x4c] sm:$0xf]
    %v265 = vld [vmem:[#allocation8 + $0x50] sm:$0xf]
    %v266 = vld [vmem:[#allocation8 + $0x54] sm:$0xf]
    %v267 = vld [vmem:[#allocation8 + $0x58] sm:$0xf]
    %v268 = vld [vmem:[#allocation8 + $0x5c] sm:$0xf]
    %v269 = vld [vmem:[#allocation8 + $0x60] sm:$0xf]
    %v270 = vld [vmem:[#allocation8 + $0x64] sm:$0xf]
    %v271 = vld [vmem:[#allocation8 + $0x68] sm:$0xf]
    %v272 = vld [vmem:[#allocation8 + $0x6c] sm:$0xf]
    %v273 = vld [vmem:[#allocation8 + $0x70] sm:$0xf]
    %v274 = vld [vmem:[#allocation8 + $0x74] sm:$0xf]
    %v275 = vld [vmem:[#allocation8 + $0x78] sm:$0xf]
    %v276 = vld [vmem:[#allocation8 + $0x7c] sm:$0xf]
    %v277 = vld [vmem:[%s4] sm:$0x1]
    %v279 = vperm.slane %v277, 0
    %v313 = vunpack.c.l.b16 %v245
    %v314 = vunpack.c.l.b16 %v246
    %v315 = vunpack.c.l.b16 %v247
    %v316 = vunpack.c.l.b16 %v248
    %v317 = vunpack.c.l.b16 %v249
    %v318 = vunpack.c.l.b16 %v250
    %v319 = vunpack.c.l.b16 %v251
    %v320 = vunpack.c.l.b16 %v252
    %v321 = vunpack.c.l.b16 %v253
    %v322 = vunpack.c.l.b16 %v254
    %v323 = vunpack.c.l.b16 %v255
    %v324 = vunpack.c.l.b16 %v256
    %v325 = vunpack.c.l.b16 %v257
    %v326 = vunpack.c.l.b16 %v258
    %v327 = vunpack.c.l.b16 %v259
    %v328 = vunpack.c.l.b16 %v260
    %v329 = vunpack.c.l.b16 %v261
    %v330 = vunpack.c.l.b16 %v262
    %v331 = vunpack.c.l.b16 %v263
    %v332 = vunpack.c.l.b16 %v264
    %v333 = vunpack.c.l.b16 %v265
    %v334 = vunpack.c.l.b16 %v266
    %v335 = vunpack.c.l.b16 %v267
    %v336 = vunpack.c.l.b16 %v268
    %v337 = vunpack.c.l.b16 %v269
    %v338 = vunpack.c.l.b16 %v270
    %v339 = vunpack.c.l.b16 %v271
    %v340 = vunpack.c.l.b16 %v272
    %v341 = vunpack.c.l.b16 %v273
    %v342 = vunpack.c.l.b16 %v274
    %v343 = vunpack.c.l.b16 %v275
    %v344 = vunpack.c.l.b16 %v276
    %v345 = vpack.c.b16 %v314, %v313
    %v346 = vpack.c.b16 %v316, %v315
    %v347 = vpack.c.b16 %v318, %v317
    %v348 = vpack.c.b16 %v320, %v319
    %v349 = vpack.c.b16 %v322, %v321
    %v350 = vpack.c.b16 %v324, %v323
    %v351 = vpack.c.b16 %v326, %v325
    %v352 = vpack.c.b16 %v328, %v327
    %v353 = vpack.c.b16 %v330, %v329
    %v354 = vpack.c.b16 %v332, %v331
    %v355 = vpack.c.b16 %v334, %v333
    %v356 = vpack.c.b16 %v336, %v335
    %v357 = vpack.c.b16 %v338, %v337
    %v358 = vpack.c.b16 %v340, %v339
    %v359 = vpack.c.b16 %v342, %v341
    %v360 = vpack.c.b16 %v344, %v343
    %377 = vmatpush.bf16.msra.mxu0 %v352
    %378 = vmatpush.bf16.msra.mxu0 %v351
    %379 = vmatpush.bf16.msra.mxu0 %v350
    %380 = vmatpush.bf16.msra.mxu0 %v349
    %381 = vmatpush.bf16.msra.mxu0 %v348
    %382 = vmatpush.bf16.msra.mxu0 %v347
    %383 = vmatpush.bf16.msra.mxu0 %v346
    %384 = vmatpush.bf16.msra.mxu0 %v345
    %385 = vmatmul.bf16.gmra.mxu0 %v243
    %v386 = vpop.f32.mrf.mxu0
    %v387 = vadd.f32 %v279, %v386
    %v388 = vpop.f32.mrf.mxu0
    %v389 = vadd.f32 %v279, %v388
    %390 = vdwg.mxu0
    %391 = vmatpush.bf16.msra.mxu0 %v360
    %392 = vmatpush.bf16.msra.mxu0 %v359
    %393 = vmatpush.bf16.msra.mxu0 %v358
    %394 = vmatpush.bf16.msra.mxu0 %v357
    %395 = vmatpush.bf16.msra.mxu0 %v356
    %396 = vmatpush.bf16.msra.mxu0 %v355
    %397 = vmatpush.bf16.msra.mxu0 %v354
    %398 = vmatpush.bf16.msra.mxu0 %v353
    %399 = vmatmul.bf16.gmra.mxu0 %v244
    %v400 = vpop.f32.mrf.mxu0
    %v401 = vadd.f32 %v387, %v400
    %v402 = vpop.f32.mrf.mxu0
    %v403 = vadd.f32 %v389, %v402
    %404 = vdwg.mxu0
    %v405 = vmax.f32 %v401, 0.0
    %v406 = vmax.f32 %v403, 0.0
    %v407 = vpack.c.bf16 %v406, %v405
    %v408 = vld [vmem:[#allocation10] sm:$0xf]
    %v409 = vld [vmem:[#allocation10 + $0x4] sm:$0xf]
    %v410 = vld [vmem:[#allocation10 + $0x8] sm:$0xf]
    %v411 = vld [vmem:[#allocation10 + $0xc] sm:$0xf]
    %v412 = vld [vmem:[#allocation10 + $0x10] sm:$0xf]
    %v413 = vld [vmem:[#allocation10 + $0x14] sm:$0xf]
    %v414 = vld [vmem:[#allocation10 + $0x18] sm:$0xf]
    %v415 = vld [vmem:[#allocation10 + $0x1c] sm:$0xf]
    %v416 = vld [vmem:[#allocation10 + $0x20] sm:$0xf]
    %v417 = vld [vmem:[#allocation10 + $0x24] sm:$0xf]
    %v418 = vld [vmem:[#allocation10 + $0x28] sm:$0xf]
    %v419 = vld [vmem:[#allocation10 + $0x2c] sm:$0xf]
    %v420 = vld [vmem:[#allocation10 + $0x30] sm:$0xf]
    %v421 = vld [vmem:[#allocation10 + $0x34] sm:$0xf]
    %v422 = vld [vmem:[#allocation10 + $0x38] sm:$0xf]
    %v423 = vld [vmem:[#allocation10 + $0x3c] sm:$0xf]
    %v424 = vld [vmem:[%s6] sm:$0x1]
    %v426 = vperm.slane %v424, 0
    %v444 = vunpack.c.l.b16 %v408
    %v445 = vunpack.c.l.b16 %v409
    %v446 = vunpack.c.l.b16 %v410
    %v447 = vunpack.c.l.b16 %v411
    %v448 = vunpack.c.l.b16 %v412
    %v449 = vunpack.c.l.b16 %v413
    %v450 = vunpack.c.l.b16 %v414
    %v451 = vunpack.c.l.b16 %v415
    %v452 = vunpack.c.l.b16 %v416
    %v453 = vunpack.c.l.b16 %v417
    %v454 = vunpack.c.l.b16 %v418
    %v455 = vunpack.c.l.b16 %v419
    %v456 = vunpack.c.l.b16 %v420
    %v457 = vunpack.c.l.b16 %v421
    %v458 = vunpack.c.l.b16 %v422
    %v459 = vunpack.c.l.b16 %v423
    %v460 = vpack.c.b16 %v445, %v444
    %v461 = vpack.c.b16 %v447, %v446
    %v462 = vpack.c.b16 %v449, %v448
    %v463 = vpack.c.b16 %v451, %v450
    %v464 = vpack.c.b16 %v453, %v452
    %v465 = vpack.c.b16 %v455, %v454
    %v466 = vpack.c.b16 %v457, %v456
    %v467 = vpack.c.b16 %v459, %v458
    %476 = vmatpush.bf16.msra.mxu0 %v467
    %477 = vmatpush.bf16.msra.mxu0 %v466
    %478 = vmatpush.bf16.msra.mxu0 %v465
    %479 = vmatpush.bf16.msra.mxu0 %v464
    %480 = vmatpush.bf16.msra.mxu0 %v463
    %481 = vmatpush.bf16.msra.mxu0 %v462
    %482 = vmatpush.bf16.msra.mxu0 %v461
    %483 = vmatpush.bf16.msra.mxu0 %v460
    %484 = vmatmul.bf16.gmra.mxu0 %v407
    %v485 = vpop.f32.mrf.mxu0
    %v486 = vadd.f32 %v426, %v485
    %v487 = vpop.f32.mrf.mxu0
    %v488 = vadd.f32 %v426, %v487
    %489 = vdwg.mxu0
    %v490 = vmax.f32 %v486, 0.0
    %v491 = vmax.f32 %v488, 0.0
    %v492 = vpack.c.bf16 %v491, %v490
    %v493 = vld [vmem:[#allocation11] sm:$0xf]
    %v494 = vld [vmem:[#allocation11 + $0x4] sm:$0xf]
    %v495 = vld [vmem:[#allocation11 + $0x8] sm:$0xf]
    %v496 = vld [vmem:[#allocation11 + $0xc] sm:$0xf]
    %v497 = vld [vmem:[#allocation11 + $0x10] sm:$0xf]
    %v498 = vld [vmem:[#allocation11 + $0x14] sm:$0xf]
    %v499 = vld [vmem:[#allocation11 + $0x18] sm:$0xf]
    %v500 = vld [vmem:[#allocation11 + $0x1c] sm:$0xf]
    %v501 = vld [vmem:[#allocation11 + $0x20] sm:$0xf]
    %v502 = vld [vmem:[#allocation11 + $0x24] sm:$0xf]
    %v503 = vld [vmem:[#allocation11 + $0x28] sm:$0xf]
    %v504 = vld [vmem:[#allocation11 + $0x2c] sm:$0xf]
    %v505 = vld [vmem:[#allocation11 + $0x30] sm:$0xf]
    %v506 = vld [vmem:[#allocation11 + $0x34] sm:$0xf]
    %v507 = vld [vmem:[#allocation11 + $0x38] sm:$0xf]
    %v508 = vld [vmem:[#allocation11 + $0x3c] sm:$0xf]
    %v509 = vld [vmem:[%s8] sm:$0x1]
    %v511 = vperm.slane %v509, 0
    %v529 = vunpack.c.l.b16 %v493
    %v530 = vunpack.c.l.b16 %v494
    %v531 = vunpack.c.l.b16 %v495
    %v532 = vunpack.c.l.b16 %v496
    %v533 = vunpack.c.l.b16 %v497
    %v534 = vunpack.c.l.b16 %v498
    %v535 = vunpack.c.l.b16 %v499
    %v536 = vunpack.c.l.b16 %v500
    %v537 = vunpack.c.l.b16 %v501
    %v538 = vunpack.c.l.b16 %v502
    %v539 = vunpack.c.l.b16 %v503
    %v540 = vunpack.c.l.b16 %v504
    %v541 = vunpack.c.l.b16 %v505
    %v542 = vunpack.c.l.b16 %v506
    %v543 = vunpack.c.l.b16 %v507
    %v544 = vunpack.c.l.b16 %v508
    %v545 = vpack.c.b16 %v530, %v529
    %v546 = vpack.c.b16 %v532, %v531
    %v547 = vpack.c.b16 %v534, %v533
    %v548 = vpack.c.b16 %v536, %v535
    %v549 = vpack.c.b16 %v538, %v537
    %v550 = vpack.c.b16 %v540, %v539
    %v551 = vpack.c.b16 %v542, %v541
    %v552 = vpack.c.b16 %v544, %v543
    %561 = vmatpush.bf16.msra.mxu0 %v552
    %562 = vmatpush.bf16.msra.mxu0 %v551
    %563 = vmatpush.bf16.msra.mxu0 %v550
    %564 = vmatpush.bf16.msra.mxu0 %v549
    %565 = vmatpush.bf16.msra.mxu0 %v548
    %566 = vmatpush.bf16.msra.mxu0 %v547
    %567 = vmatpush.bf16.msra.mxu0 %v546
    %568 = vmatpush.bf16.msra.mxu0 %v545
    %569 = vmatmul.bf16.gmra.mxu0 %v492
    %v570 = vpop.f32.mrf.mxu0
    %v571 = vadd.f32 %v511, %v570
    %v572 = vpop.f32.mrf.mxu0
    %v573 = vadd.f32 %v511, %v572
    %574 = vdwg.mxu0
    %575 = vxpose.xlu0.b32.start [1/16] %v571, 128
    %576 = vxpose.xlu0.b32.cont [2/16] %v573, 128
    %577 = vxpose.xlu0.b32.cont [3/16] 0.0, 128
    %578 = vxpose.xlu0.b32.cont [4/16] 0.0, 128
    %579 = vxpose.xlu0.b32.cont [5/16] 0.0, 128
    %580 = vxpose.xlu0.b32.cont [6/16] 0.0, 128
    %581 = vxpose.xlu0.b32.cont [7/16] 0.0, 128
    %582 = vxpose.xlu0.b32.cont [8/16] 0.0, 128
    %583 = vxpose.xlu0.b32.cont [9/16] 0.0, 128
    %584 = vxpose.xlu0.b32.cont [10/16] 0.0, 128
    %585 = vxpose.xlu0.b32.cont [11/16] 0.0, 128
    %586 = vxpose.xlu0.b32.cont [12/16] 0.0, 128
    %587 = vxpose.xlu0.b32.cont [13/16] 0.0, 128
    %588 = vxpose.xlu0.b32.cont [14/16] 0.0, 128
    %589 = vxpose.xlu0.b32.cont [15/16] 0.0, 128
    %590 = vxpose.xlu0.b32.end [16/16] 0.0, 128
    %v591 = vpop.trf.xlu0
    %v592 = vpop.trf.xlu0
    %v593 = vpop.trf.xlu0
    %v594 = vpop.trf.xlu0
    %v595 = vpop.trf.xlu0
    %v596 = vpop.trf.xlu0
    %v597 = vpop.trf.xlu0
    %v598 = vpop.trf.xlu0
    %v599 = vpop.trf.xlu0
    %v600 = vpop.trf.xlu0
    %v601 = vpop.trf.xlu0
    %v602 = vpop.trf.xlu0
    %v603 = vpop.trf.xlu0
    %v604 = vpop.trf.xlu0
    %v605 = vpop.trf.xlu0
    %v606 = vpop.trf.xlu0
    %vm607 = vcmask 122880
    %608 = vst.msk [vmem:[#allocation13] sm:$0x1] %vm607, %v591
    // Predicated region
    $region62: #{tpu_custom_call.1} parent=1 // pred_check
      _
    $region63: #{tpu_custom_call.1} parent=1 // pred_check_branch
      %610 = sbr.rel (0) target = $region65
    $region64: #{tpu_custom_call.1} parent=1 // pred_region
      %612 = vsyncadd [#allocation4], 0
      %s614 = sshll.u32 [#allocation13], 4
      %s615 = int_to_ptr.vmem [resolvable:$true] %s614
      %s616 = sshll.u32 %s9, 4
      %s617 = int_to_ptr.hbm [resolvable:$true] %s616
      %619 = dma.vmem_to_hbm [thread:$0]  %s615, 16, %s617, [#allocation4]
    $region65: #{tpu_custom_call.1} parent=1 // pred_fallthru
      _
    // Predicated region
    $region66: #{tpu_custom_call.1} parent=1 // pred_check
      _
    $region67: #{tpu_custom_call.1} parent=1 // pred_check_branch
      %621 = sbr.rel (0) target = $region69
    $region68: #{tpu_custom_call.1} parent=1 // pred_region
      %623 = dma.done [#allocation4], 16
    $region69: #{tpu_custom_call.1} parent=1 // pred_fallthru
      _
    %624 = vsyncpa [#allocation3], 1
    %625 = vsyncpa [#allocation6], 1
    %626 = vsyncpa [#allocation9], 1
    %627 = vsyncpa [#allocation12], 1
    %628 = vsyncpa [#allocation4], 1

</llo_original>
